<compile_context>
chip_gen: v6e
topology: v6e:2x2x1
jax: 0.10.0
libtpu: 0.0.40
codegen_flags: <defaults>
</compile_context>

<pallas_src>
import jax
import jax.numpy as jnp
from jax import lax
from jax.experimental import pallas as pl
from jax.experimental.pallas import tpu as pltpu

KH, KW = 3, 3
NEG_SLOPE = 0.01


def single_conv_kernel(x_ref, w_ref, b_ref, o_ref):
    # x_ref: (block_n, H, Wp*Cin)     bf16 input, padded W and Cin folded into the lane axis
    # w_ref: (KH, Wp*Cin, Wo*Cout)    bf16 block-Toeplitz weights (one slab per kh offset)
    # b_ref: (1, Wo*Cout)             f32 bias tiled along the folded output lane axis
    # o_ref: (block_n, Ho, Wo*Cout)   lane-dense output, no channel padding
    block_n, ho, wo_cout = o_ref.shape
    k_in = x_ref.shape[2]

    acc = jnp.zeros((block_n * ho, wo_cout), jnp.float32)
    for kh in range(KH):  # 3 row taps; kh is a static row offset on the H axis (no lane relayout)
        lhs = x_ref[:, kh:kh + ho, :].reshape(block_n * ho, k_in)          # bf16
        acc = acc + jnp.dot(lhs, w_ref[kh], preferred_element_type=jnp.float32)

    acc = acc + b_ref[...]                                  # f32 bias (broadcast over rows)
    out = jnp.where(acc > 0, acc, NEG_SLOPE * acc)          # LeakyReLU(0.01), f32 epilogue
    o_ref[...] = out.reshape(block_n, ho, wo_cout).astype(o_ref.dtype)


def _vmem_capacity_bytes():
    """Physical VMEM per TensorCore (v5e/v6e: 128 MiB, v7x: 64 MiB)."""
    try:
        return int(pltpu.get_tpu_info().vmem_capacity_bytes)
    except Exception:
        return 64 * 1024 * 1024   # conservative floor (v7x per-TC VMEM)


def _pick_block_n(n, h, k_in, ho, n_out, budget_bytes):
    """Images per grid step; counts double-buffered in/out blocks + f32 accumulator."""
    per_img = (2 * h * k_in * 2        # 2x bf16 input block   (pipeline double-buffer)
               + 2 * ho * n_out * 4    # 2x output block (f32) (pipeline double-buffer)
               + ho * n_out * 4        # f32 accumulator value
               + ho * k_in * 2)        # bf16 LHS slab for one kh matmul
    fixed = 2 * (KH * k_in * n_out * 2 + n_out * 4)   # resident weights + bias
    return int(max(1, min(n, (budget_bytes - fixed) // max(per_img, 1))))


def single_conv(x_nchw, weight, bias):
    """x_nchw: (N, Cin, H, W); weight: (Cout, Cin, KH, KW); bias: (Cout,). Returns NCHW f32."""
    N, Cin, H, W = x_nchw.shape
    Cout = weight.shape[0]
    Ho, Wo = H - (KH - 1), W          # padding=(0,1), stride=1
    Wp = W + 2
    K_in, N_out = Wp * Cin, Wo * Cout

    # ---- glue (plain JAX): layout folding, bf16 operand cast, block-Toeplitz weight repack ----
    x_nhwc = jnp.transpose(x_nchw, (0, 2, 3, 1))                      # (N, H, W, Cin)
    x_pad = jnp.pad(x_nhwc, ((0, 0), (0, 0), (1, 1), (0, 0)))         # (N, H, Wp, Cin)
    x_folded = x_pad.reshape(N, H, K_in).astype(jnp.bfloat16)         # (N, H, Wp*Cin)

    # w_toep[kh, wp*Cin+ci, wo*Cout+co] = weight[co, ci, kh, wp-wo]  (0 outside the 3-tap band)
    w4 = jnp.transpose(weight, (2, 3, 1, 0))                          # (KH, KW, Cin, Cout)
    kw_rel = jnp.arange(Wp)[:, None] - jnp.arange(Wo)[None, :]        # (Wp, Wo)
    valid = (kw_rel >= 0) & (kw_rel < KW)
    w_g = w4[:, jnp.clip(kw_rel, 0, KW - 1)]                          # (KH, Wp, Wo, Cin, Cout)
    w_g = jnp.where(valid[None, :, :, None, None], w_g, 0.0)
    w_toep = jnp.transpose(w_g, (0, 1, 3, 2, 4)).reshape(KH, K_in, N_out).astype(jnp.bfloat16)
    b_row = jnp.tile(bias, Wo).reshape(1, N_out).astype(jnp.float32)  # b_row[0, wo*Cout+co]=bias[co]

    # ---- VMEM-budgeted batch blocking (per-generation) ----
    vmem_cap = _vmem_capacity_bytes()
    budget = vmem_cap // 2                              # v5e/v6e: ~64 MiB, v7x: ~32 MiB
    block_n = _pick_block_n(N, H, K_in, Ho, N_out, budget)
    if N >= 2:
        # Keep >= 2 grid steps so the "parallel" batch axis shards across both v7x TensorCores.
        block_n = min(block_n, pl.cdiv(N, 2))
    n_blocks = pl.cdiv(N, block_n)
    N_pad = n_blocks * block_n
    if N_pad > N:
        x_folded = jnp.pad(x_folded, ((0, N_pad - N), (0, 0), (0, 0)))

    vmem_limit = int(min(vmem_cap * 3 // 4, budget + (16 << 20)))

    out_folded = pl.pallas_call(
        single_conv_kernel,
        # NOTE: output stays in the input dtype (f32); switch to bf16 here to halve writeback
        # if the downstream consumer tolerates it.
        out_shape=jax.ShapeDtypeStruct((N_pad, Ho, N_out), x_nchw.dtype),
        grid_spec=pltpu.PrefetchScalarGridSpec(
            num_scalar_prefetch=0,
            grid=(n_blocks,),
            in_specs=[
                pl.BlockSpec((block_n, H, K_in), lambda n: (n, 0, 0)),
                pl.BlockSpec((KH, K_in, N_out), lambda n: (0, 0, 0)),
                pl.BlockSpec((1, N_out), lambda n: (0, 0)),
            ],
            out_specs=pl.BlockSpec((block_n, Ho, N_out), lambda n: (n, 0, 0)),
        ),
        compiler_params=pltpu.CompilerParams(
            dimension_semantics=("parallel",),
            vmem_limit_bytes=vmem_limit),
    )(x_folded, w_toep, b_row)

    # Strip batch padding; unfold lanes back to (Wo, Cout) and return NCHW for the check.
    # TODO(synk): a fused consumer should take the lane-dense (N, Ho, Wo*Cout) layout directly.
    out = out_folded[:N].reshape(N, Ho, Wo, Cout)
    return jnp.transpose(out, (0, 3, 1, 2))


def reference(x_nchw, weight, bias):
    y = lax.conv_general_dilated(
        x_nchw, weight, window_strides=(1, 1),
        padding=((0, 0), (1, 1)),
        dimension_numbers=("NCHW", "OIHW", "NCHW"))
    y = y + bias[None, :, None, None]
    return jnp.where(y > 0, y, NEG_SLOPE * y)


if __name__ == "__main__":
    key = jax.random.PRNGKey(0)
    k_x, k_w, k_b = jax.random.split(key, 3)

    N, Cin, H, W = 2, 4, 16, 16
    Cout = 8

    x = jax.random.normal(k_x, (N, Cin, H, W), jnp.float32)
    # Deterministic synthetic parameters (shapes match nn.Conv2d(Cin, Cout, 3)).
    fan_in = Cin * KH * KW
    bound = 1.0 / jnp.sqrt(fan_in)
    weight = jax.random.uniform(k_w, (Cout, Cin, KH, KW), jnp.float32, -bound, bound)
    bias = jax.random.uniform(k_b, (Cout,), jnp.float32, -bound, bound)

    out = single_conv(x, weight, bias)
    out = jax.block_until_ready(out)

    ref = reference(x, weight, bias)
    assert out.shape == (N, Cout, H - 2, W), out.shape
    # bf16 MXU operands with f32 accumulation: relaxed tolerance vs. the f32 reference.
    assert jnp.allclose(out, ref, atol=5e-2, rtol=5e-2), float(jnp.max(jnp.abs(out - ref)))

    print("KERNEL_OK")
</pallas_src>

<mosaic_0001>
module attributes {stable_mosaic.version = 11 : i64} {
  func.func @single_conv_kernel(%arg0: i32, %arg1: memref<1x16x72xbf16, #tpu.memory_space<vmem>>, %arg2: memref<3x72x128xbf16, #tpu.memory_space<vmem>>, %arg3: memref<1x128xf32, #tpu.memory_space<vmem>>, %arg4: memref<1x14x128xf32, #tpu.memory_space<vmem>>) attributes {dimension_semantics = [#tpu.dimension_semantics<parallel>], iteration_bounds = array<i64: 2>, scalar_prefetch = 0 : i64, scratch_operands = 0 : i64, tpu.core_type = #tpu.core_type<tc>, window_params = [{transform_indices = @transform_0, window_bounds = array<i64: 1, 16, 72>}, {pipeline_mode = #tpu.pipeline_mode<synchronous>, transform_indices = @transform_1, window_bounds = array<i64: 3, 72, 128>}, {pipeline_mode = #tpu.pipeline_mode<synchronous>, transform_indices = @transform_2, window_bounds = array<i64: 1, 128>}, {transform_indices = @transform_3, window_bounds = array<i64: 1, 14, 128>}]} {
    %cst = arith.constant 0.000000e+00 : f32
    %0 = vector.broadcast %cst : f32 to vector<14x128xf32>
    %c0 = arith.constant 0 : index
    %c0_0 = arith.constant 0 : index
    %c0_1 = arith.constant 0 : index
    %1 = vector.load %arg1[%c0, %c0_0, %c0_1] : memref<1x16x72xbf16, #tpu.memory_space<vmem>>, vector<1x14x72xbf16>
    %2 = vector.shape_cast %1 : vector<1x14x72xbf16> to vector<14x72xbf16>
    %c0_2 = arith.constant 0 : index
    %c0_3 = arith.constant 0 : index
    %c0_4 = arith.constant 0 : index
    %3 = vector.load %arg2[%c0_2, %c0_3, %c0_4] : memref<3x72x128xbf16, #tpu.memory_space<vmem>>, vector<1x72x128xbf16>
    %4 = vector.shape_cast %3 : vector<1x72x128xbf16> to vector<72x128xbf16>
    %cst_5 = arith.constant dense<0.000000e+00> : vector<14x128xf32>
    %5 = tpu.matmul %2, %4, %cst_5 {dimension_numbers = #tpu.dot_dimension_numbers<[1], [0], [0], [1], [0, 0, 1, 1], [], []>} : vector<14x72xbf16>, vector<72x128xbf16>, vector<14x128xf32> -> vector<14x128xf32>
    %6 = arith.addf %0, %5 : vector<14x128xf32>
    %c0_6 = arith.constant 0 : index
    %c1 = arith.constant 1 : index
    %c0_7 = arith.constant 0 : index
    %7 = vector.load %arg1[%c0_6, %c1, %c0_7] : memref<1x16x72xbf16, #tpu.memory_space<vmem>>, vector<1x14x72xbf16>
    %8 = vector.shape_cast %7 : vector<1x14x72xbf16> to vector<14x72xbf16>
    %c1_8 = arith.constant 1 : index
    %c0_9 = arith.constant 0 : index
    %c0_10 = arith.constant 0 : index
    %9 = vector.load %arg2[%c1_8, %c0_9, %c0_10] : memref<3x72x128xbf16, #tpu.memory_space<vmem>>, vector<1x72x128xbf16>
    %10 = vector.shape_cast %9 : vector<1x72x128xbf16> to vector<72x128xbf16>
    %cst_11 = arith.constant dense<0.000000e+00> : vector<14x128xf32>
    %11 = tpu.matmul %8, %10, %cst_11 {dimension_numbers = #tpu.dot_dimension_numbers<[1], [0], [0], [1], [0, 0, 1, 1], [], []>} : vector<14x72xbf16>, vector<72x128xbf16>, vector<14x128xf32> -> vector<14x128xf32>
    %12 = arith.addf %6, %11 : vector<14x128xf32>
    %c0_12 = arith.constant 0 : index
    %c2 = arith.constant 2 : index
    %c0_13 = arith.constant 0 : index
    %13 = vector.load %arg1[%c0_12, %c2, %c0_13] : memref<1x16x72xbf16, #tpu.memory_space<vmem>>, vector<1x14x72xbf16>
    %14 = vector.shape_cast %13 : vector<1x14x72xbf16> to vector<14x72xbf16>
    %c2_14 = arith.constant 2 : index
    %c0_15 = arith.constant 0 : index
    %c0_16 = arith.constant 0 : index
    %15 = vector.load %arg2[%c2_14, %c0_15, %c0_16] : memref<3x72x128xbf16, #tpu.memory_space<vmem>>, vector<1x72x128xbf16>
    %16 = vector.shape_cast %15 : vector<1x72x128xbf16> to vector<72x128xbf16>
    %cst_17 = arith.constant dense<0.000000e+00> : vector<14x128xf32>
    %17 = tpu.matmul %14, %16, %cst_17 {dimension_numbers = #tpu.dot_dimension_numbers<[1], [0], [0], [1], [0, 0, 1, 1], [], []>} : vector<14x72xbf16>, vector<72x128xbf16>, vector<14x128xf32> -> vector<14x128xf32>
    %18 = arith.addf %12, %17 : vector<14x128xf32>
    %c0_18 = arith.constant 0 : index
    %c0_19 = arith.constant 0 : index
    %19 = vector.load %arg3[%c0_18, %c0_19] : memref<1x128xf32, #tpu.memory_space<vmem>>, vector<1x128xf32>
    %20 = vector.broadcast %19 : vector<1x128xf32> to vector<14x128xf32>
    %21 = arith.addf %18, %20 : vector<14x128xf32>
    %cst_20 = arith.constant 0.000000e+00 : f32
    %22 = vector.broadcast %cst_20 : f32 to vector<14x128xf32>
    %23 = arith.cmpf ogt, %21, %22 : vector<14x128xf32>
    %cst_21 = arith.constant 0.00999999977 : f32
    %24 = vector.broadcast %cst_21 : f32 to vector<14x128xf32>
    %25 = arith.mulf %24, %21 : vector<14x128xf32>
    %26 = arith.select %23, %21, %25 : vector<14x128xi1>, vector<14x128xf32>
    %27 = vector.shape_cast %26 : vector<14x128xf32> to vector<1x14x128xf32>
    %c0_22 = arith.constant 0 : index
    %c0_23 = arith.constant 0 : index
    %c0_24 = arith.constant 0 : index
    %28 = vector.load %arg4[%c0_22, %c0_23, %c0_24] : memref<1x14x128xf32, #tpu.memory_space<vmem>>, vector<1x14x128xf32>
    tpu.vector_store %arg4[%c0_22, %c0_23, %c0_24], %27 {strides = array<i32>} : memref<1x14x128xf32, #tpu.memory_space<vmem>>, vector<1x14x128xf32>,
    return
  }
  func.func @transform_0(%arg0: i32) -> (i32, i32, i32) {
    %c0_i32 = arith.constant 0 : i32
    %c0_i32_0 = arith.constant 0 : i32
    %c0_i32_1 = arith.constant 0 : i32
    return %arg0, %c0_i32, %c0_i32_0 : i32, i32, i32
  }
  func.func @transform_1(%arg0: i32) -> (i32, i32, i32) {
    %c0_i32 = arith.constant 0 : i32
    %c0_i32_0 = arith.constant 0 : i32
    %c0_i32_1 = arith.constant 0 : i32
    %c0_i32_2 = arith.constant 0 : i32
    return %c0_i32, %c0_i32_0, %c0_i32_1 : i32, i32, i32
  }
  func.func @transform_2(%arg0: i32) -> (i32, i32) {
    %c0_i32 = arith.constant 0 : i32
    %c0_i32_0 = arith.constant 0 : i32
    %c0_i32_1 = arith.constant 0 : i32
    return %c0_i32, %c0_i32_0 : i32, i32
  }
  func.func @transform_3(%arg0: i32) -> (i32, i32, i32) {
    %c0_i32 = arith.constant 0 : i32
    %c0_i32_0 = arith.constant 0 : i32
    %c0_i32_1 = arith.constant 0 : i32
    return %arg0, %c0_i32, %c0_i32_0 : i32, i32, i32
  }
}

</mosaic_0001>

<llo_original>
// kernel: tpu_custom_call.1
$region0: #{tpu_custom_call.1}
  #allocation0 [shape = 'u32[]', space=smem, size = 0x4, offset = 0x4, fixed_abs, tag = 'smem constant byte address 0x4 - core index']
  #allocation1 [shape = 'u32[144,128]{1,0:T(1,128)}', space=vmem, size = 0x12000, scoped, tag = 'internal scratch']
  %s0 = inlined_call_operand.hbm [shape: bf16[2,16,72], index: 0, kind: input, shape index: {}]
  %s1 = inlined_call_operand.hbm [shape: bf16[3,72,128], index: 1, kind: input, shape index: {}]
  %s2 = inlined_call_operand.vmem [shape: f32[1,128], index: 2, kind: input, shape index: {}]
  %s3 = inlined_call_operand.vmem [shape: f32[2,14,128], index: 3, kind: output, shape index: {}]
  %s4 = sld [smem:[#allocation0]]
  $region53: #{tpu_custom_call.1} parent=0
    _
  %s6 = ssub.s32 1, %s4
  %s7 = scalar_select 0, %s6, %s4
  $region1: #{tpu_custom_call.1} parent=0
    #allocation2 [shape = 'u8[8192]{0}', space=vmem, size = 0x2000, scoped, tag = 'input window, operand 0']
    #allocation3 [shape = 's32[2]{0}', space=sflag, size = 0x8, scoped, tag = 'scoped memory for tpu_custom_call.1']
    #allocation4 [shape = 'u8[55296]{0}', space=vmem, size = 0xd800, scoped, tag = 'input window, operand 1, single buffered']
    #allocation5 [shape = 's32[1]{0}', space=sflag, size = 0x4, scoped, tag = 'scoped memory for tpu_custom_call.1']
    %8 = vsyncpa [#allocation3], 0
    %s9 = scalar_lea.sflag [#allocation3], 1
    %10 = vsyncpa %s9, 0
    %11 = vsyncpa [#allocation5], 0
    loop: start=0, step=1, limit=4
    $region2: #{tpu_custom_call.1} parent=1 // loop_pre_header
      _
    $region3: #{tpu_custom_call.1} parent=1 // loop_header
      %s13 = sphi 0, %s17
      %p14 = scmp.ge.s32.totalorder %s13, 4
      %s23 = sphi 0, %s25
      %s26 = sphi 0, %s23
      %s27 = sphi 0, %s26
      %s43 = sphi 0, %s27
      %s47 = sphi 0, %s47
      %s49 = sphi 0, %s47
      %s50 = sphi 0, %s49
      %s64 = sphi 0, %s50
      %s68 = sphi 0, %s68
      %s70 = sphi 0, %s68
      %s71 = sphi 0, %s70
      %s85 = sphi 0, %s71
      %s91 = sphi 0, %s93
      %s94 = sphi 0, %s91
      %s95 = sphi 0, %s94
      %s111 = sphi 0, %s95
    $region4: #{tpu_custom_call.1} parent=1 // loop_header_branch
      %16 = sbr.rel (%p14) target = $region8
    $region5: #{tpu_custom_call.1} parent=1 // loop_body
      %s18 = ssub.s32 %s13, 1
      %s19 = ssub.s32 %s13, 2
      %s20 = sadd.s32 %s13, 1
      %s21 = ssub.s32 %s13, %s20
      %p22 = scmp.eq.s32.totalorder %s21, 0
      %s24 = sadd.s32 %s23, 1
      %s25 = scalar_select %p22, %s23, %s24
      %p28 = pneg %p22
      %p29 = scmp.eq.s32.totalorder %s13, 1
      %p30 = por %p28, %p29
      %p31 = scmp.ne.s32.totalorder %s23, %s26
      %p32 = scmp.eq.s32.totalorder %s13, 0
      %p33 = por %p31, %p32
      %p34 = scmp.ne.s32.totalorder %s23, %s26
      %p35 = scmp.eq.s32.totalorder %s18, 1
      %p36 = por %p34, %p35
      %p37 = scmp.ne.s32.totalorder %s26, %s27
      %p38 = scmp.eq.s32.totalorder %s18, 0
      %p39 = por %p37, %p38
      %p40 = scmp.ne.s32.totalorder %s26, %s27
      %p41 = scmp.eq.s32.totalorder %s19, 1
      %p42 = por %p40, %p41
      %p44 = scmp.ne.s32.totalorder %s27, %s43
      %p45 = scmp.eq.s32.totalorder %s19, 0
      %p46 = por %p44, %p45
      %s48 = sadd.s32 %s47, 1
      %p51 = scmp.eq.s32.totalorder %s13, 1
      %p52 = scmp.ne.s32.totalorder %s47, %s49
      %p53 = scmp.eq.s32.totalorder %s13, 0
      %p54 = por %p52, %p53
      %p55 = scmp.ne.s32.totalorder %s47, %s49
      %p56 = scmp.eq.s32.totalorder %s18, 1
      %p57 = por %p55, %p56
      %p58 = scmp.ne.s32.totalorder %s49, %s50
      %p59 = scmp.eq.s32.totalorder %s18, 0
      %p60 = por %p58, %p59
      %p61 = scmp.ne.s32.totalorder %s49, %s50
      %p62 = scmp.eq.s32.totalorder %s19, 1
      %p63 = por %p61, %p62
      %p65 = scmp.ne.s32.totalorder %s50, %s64
      %p66 = scmp.eq.s32.totalorder %s19, 0
      %p67 = por %p65, %p66
      %s69 = sadd.s32 %s68, 1
      %p72 = scmp.eq.s32.totalorder %s13, 1
      %p73 = scmp.ne.s32.totalorder %s68, %s70
      %p74 = scmp.eq.s32.totalorder %s13, 0
      %p75 = por %p73, %p74
      %p76 = scmp.ne.s32.totalorder %s68, %s70
      %p77 = scmp.eq.s32.totalorder %s18, 1
      %p78 = por %p76, %p77
      %p79 = scmp.ne.s32.totalorder %s70, %s71
      %p80 = scmp.eq.s32.totalorder %s18, 0
      %p81 = por %p79, %p80
      %p82 = scmp.ne.s32.totalorder %s70, %s71
      %p83 = scmp.eq.s32.totalorder %s19, 1
      %p84 = por %p82, %p83
      %p86 = scmp.ne.s32.totalorder %s71, %s85
      %p87 = scmp.eq.s32.totalorder %s19, 0
      %p88 = por %p86, %p87
      %s89 = ssub.s32 %s13, %s20
      %p90 = scmp.eq.s32.totalorder %s89, 0
      %s92 = sadd.s32 %s91, 1
      %s93 = scalar_select %p90, %s91, %s92
      %p96 = pneg %p90
      %p97 = scmp.eq.s32.totalorder %s13, 1
      %p98 = por %p96, %p97
      %p99 = scmp.ne.s32.totalorder %s91, %s94
      %p100 = scmp.eq.s32.totalorder %s13, 0
      %p101 = por %p99, %p100
      %p102 = scmp.ne.s32.totalorder %s91, %s94
      %p103 = scmp.eq.s32.totalorder %s18, 1
      %p104 = por %p102, %p103
      %p105 = scmp.ne.s32.totalorder %s94, %s95
      %p106 = scmp.eq.s32.totalorder %s18, 0
      %p107 = por %p105, %p106
      %p108 = scmp.ne.s32.totalorder %s94, %s95
      %p109 = scmp.eq.s32.totalorder %s19, 1
      %p110 = por %p108, %p109
      %p112 = scmp.ne.s32.totalorder %s95, %s111
      %p113 = scmp.eq.s32.totalorder %s19, 0
      %p114 = por %p112, %p113
      %p115 = scmp.le.s32.totalorder 1, %s13
      %p116 = scmp.lt.s32.totalorder %s13, 3
      %p117 = pnand %p115, %p116
      %p118 = pneg %p117
      // Predicated region
      $region9: #{tpu_custom_call.1} parent=5 // pred_check
        _
      $region10: #{tpu_custom_call.1} parent=5 // pred_check_branch
        %120 = sbr.rel (%p117) target = $region12
      $region11: #{tpu_custom_call.1} parent=5 // pred_region
        %s121 = ssub.s32 %s13, 1
        // Predicated region
        $region13: #{tpu_custom_call.1} parent=11 // pred_check
          %p122 = pneg %p60
        $region14: #{tpu_custom_call.1} parent=11 // pred_check_branch
          %124 = sbr.rel (%p122) target = $region16
        $region15: #{tpu_custom_call.1} parent=11 // pred_region
          %s126 = ssub.s32 1728, 1728
          %127 = vsyncadd [#allocation5], %s126
          %s128 = sshll.u32 [#allocation4], 4
          %s129 = int_to_ptr.vmem [resolvable:$true] %s128
          %134 = dma.hbm_to_vmem [thread:$0]  %s1, 1728, %s129, [#allocation5], 64, 64, 4
        $region16: #{tpu_custom_call.1} parent=11 // pred_fallthru
          _
        // Predicated region
        $region17: #{tpu_custom_call.1} parent=11 // pred_check
          %p135 = pneg %p81
        $region18: #{tpu_custom_call.1} parent=11 // pred_check_branch
          %137 = sbr.rel (%p135) target = $region20
        $region19: #{tpu_custom_call.1} parent=11 // pred_region
          _
        $region20: #{tpu_custom_call.1} parent=11 // pred_fallthru
          _
      $region12: #{tpu_custom_call.1} parent=5 // pred_fallthru
        _
      %p138 = scmp.lt.s32.totalorder %s13, 2
      // Predicated region
      $region21: #{tpu_custom_call.1} parent=5 // pred_check
        %p139 = pneg %p138
      $region22: #{tpu_custom_call.1} parent=5 // pred_check_branch
        %141 = sbr.rel (%p139) target = $region24
      $region23: #{tpu_custom_call.1} parent=5 // pred_region
        // Predicated region
        $region25: #{tpu_custom_call.1} parent=23 // pred_check
          %p142 = pneg %p33
        $region26: #{tpu_custom_call.1} parent=23 // pred_check_branch
          %144 = sbr.rel (%p142) target = $region28
        $region27: #{tpu_custom_call.1} parent=23 // pred_region
          %s145 = sand.u32 %s23, 1
          %s146 = scalar_lea.sflag [#allocation3], %s145
          %s147 = sand.u32 %s23, 1
          %s148 = smul.addr %s147, 8
          %s149 = scalar_lea.vmem [#allocation2], %s148
          %s151 = ssub.s32 128, 128
          %152 = vsyncadd %s146, %s151
          %s153 = smul.addr %s13, 2
          %s154 = smul.addr %s153, 64
          %s155 = scalar_lea.hbm %s0, %s154
          %s156 = sshll.u32 %s149, 4
          %s157 = int_to_ptr.vmem [resolvable:$true] %s156
          %162 = dma.hbm_to_vmem [thread:$0]  %s155, 128, %s157, %s146, 64, 64, 4
        $region28: #{tpu_custom_call.1} parent=23 // pred_fallthru
          _
      $region24: #{tpu_custom_call.1} parent=5 // pred_fallthru
        _
      %p163 = scmp.le.s32.totalorder 1, %s13
      %p164 = scmp.lt.s32.totalorder %s13, 3
      %p165 = pnand %p163, %p164
      %p166 = pneg %p165
      // Predicated region
      $region29: #{tpu_custom_call.1} parent=5 // pred_check
        _
      $region30: #{tpu_custom_call.1} parent=5 // pred_check_branch
        %168 = sbr.rel (%p165) target = $region32
      $region31: #{tpu_custom_call.1} parent=5 // pred_region
        %s169 = ssub.s32 %s13, 1
        %s170 = sand.u32 %s26, 1
        %s171 = scalar_lea.sflag [#allocation3], %s170
        %s172 = sand.u32 %s26, 1
        %s173 = smul.addr %s172, 8
        %s174 = scalar_lea.vmem [#allocation2], %s173
        // Predicated region
        $region33: #{tpu_custom_call.1} parent=31 // pred_check
          %p175 = pneg %p39
        $region34: #{tpu_custom_call.1} parent=31 // pred_check_branch
          %177 = sbr.rel (%p175) target = $region36
        $region35: #{tpu_custom_call.1} parent=31 // pred_region
          %178 = dma.done %s171, 128
        $region36: #{tpu_custom_call.1} parent=31 // pred_fallthru
          _
        // Predicated region
        $region37: #{tpu_custom_call.1} parent=31 // pred_check
          %p179 = pneg %p60
        $region38: #{tpu_custom_call.1} parent=31 // pred_check_branch
          %181 = sbr.rel (%p179) target = $region40
        $region39: #{tpu_custom_call.1} parent=31 // pred_region
          %182 = dma.done [#allocation5], 1728
        $region40: #{tpu_custom_call.1} parent=31 // pred_fallthru
          _
        %s183 = sand.u32 %s26, 1
        %s184 = scalar_lea.sflag [#allocation3], %s183
        %s185 = sand.u32 %s26, 1
        %s186 = smul.addr %s185, 8
        %s187 = scalar_lea.vmem [#allocation2], %s186
        %p188 = pneg %p39
        %p189 = pneg %p36
        %p190 = pneg %p60
        %p191 = pneg %p57
        %p192 = pneg %p81
        %p193 = pneg %p78
        %p194 = pneg %p107
        %p195 = pneg %p104
        %p196 = scmp.lt.s32.totalorder %s18, 1
        %s197 = scalar_select %p196, %s18, 1
        %s198 = smul.addr %s197, 2
        %s199 = smul.addr %s198, 8
        %s200 = scalar_lea.vmem %s3, %s199
        %p201 = scmp.lt.s32.totalorder %s18, 1
        %s202 = scalar_select %p201, %s18, 1
        %s203 = smul.addr %s202, 2
        %s204 = smul.addr %s203, 8
        %s205 = scalar_lea.vmem %s3, %s204
        %v207 = vld [vmem:[%s174] sm:$0xf]
        %v208 = vld [vmem:[%s174 + $0x4] sm:$0x7]
        %v209 = vld [vmem:[#allocation4] sm:$0xf]
        %v210 = vld [vmem:[#allocation4 + $0x4] sm:$0xf]
        %v211 = vld [vmem:[#allocation4 + $0x8] sm:$0xf]
        %v212 = vld [vmem:[#allocation4 + $0xc] sm:$0xf]
        %v213 = vld [vmem:[#allocation4 + $0x10] sm:$0xf]
        %v214 = vld [vmem:[#allocation4 + $0x14] sm:$0xf]
        %v215 = vld [vmem:[#allocation4 + $0x18] sm:$0xf]
        %v216 = vld [vmem:[#allocation4 + $0x1c] sm:$0xf]
        %v217 = vld [vmem:[#allocation4 + $0x20] sm:$0xf]
        %v218 = vld [vmem:[%s174 + $0x4] sm:$0xf]
        %s219 = scalar_lea.vmem [#allocation4], 36
        %v220 = vld [vmem:[%s219] sm:$0xf]
        %v221 = vld [vmem:[%s219 + $0x4] sm:$0xf]
        %v222 = vld [vmem:[%s219 + $0x8] sm:$0xf]
        %v223 = vld [vmem:[%s219 + $0xc] sm:$0xf]
        %v224 = vld [vmem:[%s219 + $0x10] sm:$0xf]
        %v225 = vld [vmem:[%s219 + $0x14] sm:$0xf]
        %v226 = vld [vmem:[%s219 + $0x18] sm:$0xf]
        %v227 = vld [vmem:[%s219 + $0x1c] sm:$0xf]
        %v228 = vld [vmem:[%s219 + $0x20] sm:$0xf]
        %v231 = vunpack.c.l.b16 %v207
        %v232 = vunpack.c.l.b16 %v218
        %v233 = vpack.c.b16 %v232, %v231
        %v235 = vshrl.u32 %v233, 16
        %v237 = vshll.u32 %v233, 16
        %v239 = vrot.slane %v237, 1
        %v240 = vor.u32 %v235, %v239
        %v250 = vunpack.c.l.b16 %v220
        %v251 = vunpack.c.l.b16 %v221
        %v252 = vunpack.c.l.b16 %v222
        %v253 = vunpack.c.l.b16 %v223
        %v254 = vunpack.c.l.b16 %v224
        %v255 = vunpack.c.l.b16 %v225
        %v256 = vunpack.c.l.b16 %v226
        %v257 = vunpack.c.l.b16 %v227
        %v258 = vunpack.c.l.b16 %v228
        %v259 = vpack.c.b16 %v251, %v250
        %v260 = vpack.c.b16 %v253, %v252
        %v261 = vpack.c.b16 %v255, %v254
        %v262 = vpack.c.b16 %v257, %v256
        %v263 = vpack.c.b16 %v258, %v258
        %vm268 = vcmask 588800
        %v270 = vsel %vm268, %v240, 0
        %vm272 = vcmask 1043456
        %v274 = vsel %vm272, %v263, 0
        %276 = vmatprep.subr.bf16.mxu0 0
        %277 = vmatpush1.bf16.msra.mxu0 0
        %278 = vmatprep.subr.bf16.mxu0 0
        %279 = vmatpush1.bf16.msra.mxu0 0
        %280 = vmatprep.subr.bf16.mxu0 0
        %281 = vmatpush1.bf16.msra.mxu0 0
        %282 = vmatprep.subr.bf16.mxu0 0
        %283 = vmatpush1.bf16.msra.mxu0 %v274
        %284 = vmatprep.subr.bf16.mxu0 0
        %285 = vmatpush1.bf16.msra.mxu0 %v262
        %286 = vmatprep.subr.bf16.mxu0 0
        %287 = vmatpush1.bf16.msra.mxu0 %v261
        %288 = vmatprep.subr.bf16.mxu0 0
        %289 = vmatpush1.bf16.msra.mxu0 %v260
        %290 = vmatprep.subr.bf16.mxu0 0
        %291 = vmatpush1.bf16.msra.mxu0 %v259
        %292 = vmatprep.subr.bf16.mxu0 0
        %293 = vmatpush2.bf16.msra.mxu0 0
        %294 = vmatprep.subr.bf16.mxu0 0
        %295 = vmatpush2.bf16.msra.mxu0 0
        %296 = vmatprep.subr.bf16.mxu0 0
        %297 = vmatpush2.bf16.msra.mxu0 0
        %298 = vmatprep.subr.bf16.mxu0 0
        %299 = vmatpush2.bf16.msra.mxu0 0
        %300 = vmatprep.subr.bf16.mxu0 0
        %301 = vmatpush2.bf16.msra.mxu0 0
        %302 = vmatprep.subr.bf16.mxu0 0
        %303 = vmatpush2.bf16.msra.mxu0 0
        %304 = vmatprep.subr.bf16.mxu0 0
        %305 = vmatpush2.bf16.msra.mxu0 0
        %306 = vmatprep.subr.bf16.mxu0 0
        %307 = vmatpush2.bf16.msra.mxu0 0
        %308 = vmatprep.mubr.bf16.mxu0 0
        %309 = vmatmul.mubr.bf16.gmra.mxu0 %v270
        %v310 = vpop.f32.mrf.mxu0
        %v311 = vadd.f32 0.0, %v310
        %v312 = vpop.f32.mrf.mxu0
        %v313 = vpop.f32.mrf.mxu0
        %v314 = vadd.f32 0.0, %v313
        %v315 = vpop.f32.mrf.mxu0
        %316 = vdwg.mxu0
        %v318 = vunpack.c.l.b16 %v208
        %v319 = vpack.c.b16 %v318, %v231
        %v329 = vunpack.c.l.b16 %v209
        %v330 = vunpack.c.l.b16 %v210
        %v331 = vunpack.c.l.b16 %v211
        %v332 = vunpack.c.l.b16 %v212
        %v333 = vunpack.c.l.b16 %v213
        %v334 = vunpack.c.l.b16 %v214
        %v335 = vunpack.c.l.b16 %v215
        %v336 = vunpack.c.l.b16 %v216
        %v337 = vunpack.c.l.b16 %v217
        %v338 = vpack.c.b16 %v330, %v329
        %v339 = vpack.c.b16 %v332, %v331
        %v340 = vpack.c.b16 %v334, %v333
        %v341 = vpack.c.b16 %v336, %v335
        %v342 = vpack.c.b16 %v337, %v337
        %v348 = vsel %vm268, %v319, 0
        %v351 = vsel %vm272, %v342, 0
        %353 = vmatprep.subr.bf16.mxu0 0
        %354 = vmatpush1.bf16.msra.mxu0 0
        %355 = vmatprep.subr.bf16.mxu0 0
        %356 = vmatpush1.bf16.msra.mxu0 0
        %357 = vmatprep.subr.bf16.mxu0 0
        %358 = vmatpush1.bf16.msra.mxu0 0
        %359 = vmatprep.subr.bf16.mxu0 0
        %360 = vmatpush1.bf16.msra.mxu0 %v351
        %361 = vmatprep.subr.bf16.mxu0 0
        %362 = vmatpush1.bf16.msra.mxu0 %v341
        %363 = vmatprep.subr.bf16.mxu0 0
        %364 = vmatpush1.bf16.msra.mxu0 %v340
        %365 = vmatprep.subr.bf16.mxu0 0
        %366 = vmatpush1.bf16.msra.mxu0 %v339
        %367 = vmatprep.subr.bf16.mxu0 0
        %368 = vmatpush1.bf16.msra.mxu0 %v338
        %369 = vmatprep.subr.bf16.mxu0 0
        %370 = vmatpush2.bf16.msra.mxu0 0
        %371 = vmatprep.subr.bf16.mxu0 0
        %372 = vmatpush2.bf16.msra.mxu0 0
        %373 = vmatprep.subr.bf16.mxu0 0
        %374 = vmatpush2.bf16.msra.mxu0 0
        %375 = vmatprep.subr.bf16.mxu0 0
        %376 = vmatpush2.bf16.msra.mxu0 0
        %377 = vmatprep.subr.bf16.mxu0 0
        %378 = vmatpush2.bf16.msra.mxu0 0
        %379 = vmatprep.subr.bf16.mxu0 0
        %380 = vmatpush2.bf16.msra.mxu0 0
        %381 = vmatprep.subr.bf16.mxu0 0
        %382 = vmatpush2.bf16.msra.mxu0 0
        %383 = vmatprep.subr.bf16.mxu0 0
        %384 = vmatpush2.bf16.msra.mxu0 0
        %385 = vmatprep.mubr.bf16.mxu0 0
        %386 = vmatmul.mubr.bf16.gmra.mxu0 %v348
        %v387 = vpop.f32.mrf.mxu0
        %v388 = vadd.f32 %v311, %v387
        %v389 = vpop.f32.mrf.mxu0
        %v390 = vpop.f32.mrf.mxu0
        %v391 = vadd.f32 %v314, %v390
        %v392 = vpop.f32.mrf.mxu0
        %393 = vdwg.mxu0
        %v394 = vld [vmem:[%s174] sm:$0xe]
        %s395 = scalar_lea.vmem [#allocation4], 72
        %v396 = vld [vmem:[%s395] sm:$0xf]
        %v397 = vld [vmem:[%s395 + $0x4] sm:$0xf]
        %v398 = vld [vmem:[%s395 + $0x8] sm:$0xf]
        %v399 = vld [vmem:[%s395 + $0xc] sm:$0xf]
        %v400 = vld [vmem:[%s395 + $0x10] sm:$0xf]
        %v401 = vld [vmem:[%s395 + $0x14] sm:$0xf]
        %v402 = vld [vmem:[%s395 + $0x18] sm:$0xf]
        %v403 = vld [vmem:[%s395 + $0x1c] sm:$0xf]
        %v404 = vld [vmem:[%s395 + $0x20] sm:$0xf]
        %v406 = vunpack.c.l.b16 %v394
        %v407 = vpack.c.b16 %v232, %v406
        %v408 = vrot.slane %v407, 1
        %v418 = vunpack.c.l.b16 %v396
        %v419 = vunpack.c.l.b16 %v397
        %v420 = vunpack.c.l.b16 %v398
        %v421 = vunpack.c.l.b16 %v399
        %v422 = vunpack.c.l.b16 %v400
        %v423 = vunpack.c.l.b16 %v401
        %v424 = vunpack.c.l.b16 %v402
        %v425 = vunpack.c.l.b16 %v403
        %v426 = vunpack.c.l.b16 %v404
        %v427 = vpack.c.b16 %v419, %v418
        %v428 = vpack.c.b16 %v421, %v420
        %v429 = vpack.c.b16 %v423, %v422
        %v430 = vpack.c.b16 %v425, %v424
        %v431 = vpack.c.b16 %v426, %v426
        %v437 = vsel %vm268, %v408, 0
        %v440 = vsel %vm272, %v431, 0
        %442 = vmatprep.subr.bf16.mxu0 0
        %443 = vmatpush1.bf16.msra.mxu0 0
        %444 = vmatprep.subr.bf16.mxu0 0
        %445 = vmatpush1.bf16.msra.mxu0 0
        %446 = vmatprep.subr.bf16.mxu0 0
        %447 = vmatpush1.bf16.msra.mxu0 0
        %448 = vmatprep.subr.bf16.mxu0 0
        %449 = vmatpush1.bf16.msra.mxu0 %v440
        %450 = vmatprep.subr.bf16.mxu0 0
        %451 = vmatpush1.bf16.msra.mxu0 %v430
        %452 = vmatprep.subr.bf16.mxu0 0
        %453 = vmatpush1.bf16.msra.mxu0 %v429
        %454 = vmatprep.subr.bf16.mxu0 0
        %455 = vmatpush1.bf16.msra.mxu0 %v428
        %456 = vmatprep.subr.bf16.mxu0 0
        %457 = vmatpush1.bf16.msra.mxu0 %v427
        %458 = vmatprep.subr.bf16.mxu0 0
        %459 = vmatpush2.bf16.msra.mxu0 0
        %460 = vmatprep.subr.bf16.mxu0 0
        %461 = vmatpush2.bf16.msra.mxu0 0
        %462 = vmatprep.subr.bf16.mxu0 0
        %463 = vmatpush2.bf16.msra.mxu0 0
        %464 = vmatprep.subr.bf16.mxu0 0
        %465 = vmatpush2.bf16.msra.mxu0 0
        %466 = vmatprep.subr.bf16.mxu0 0
        %467 = vmatpush2.bf16.msra.mxu0 0
        %468 = vmatprep.subr.bf16.mxu0 0
        %469 = vmatpush2.bf16.msra.mxu0 0
        %470 = vmatprep.subr.bf16.mxu0 0
        %471 = vmatpush2.bf16.msra.mxu0 0
        %472 = vmatprep.subr.bf16.mxu0 0
        %473 = vmatpush2.bf16.msra.mxu0 0
        %474 = vmatprep.mubr.bf16.mxu0 0
        %475 = vmatmul.mubr.bf16.gmra.mxu0 %v437
        %v476 = vpop.f32.mrf.mxu0
        %v477 = vadd.f32 0.0, %v476
        %v478 = vpop.f32.mrf.mxu0
        %v479 = vpop.f32.mrf.mxu0
        %v480 = vadd.f32 0.0, %v479
        %v481 = vpop.f32.mrf.mxu0
        %482 = vdwg.mxu0
        %v483 = vadd.f32 %v388, %v477
        %v484 = vadd.f32 %v391, %v480
        %v485 = vld [vmem:[%s2] sm:$0x1]
        %v487 = vlaneseq
        %v488 = vshrl.u32 %v487, 7
        %v489 = vsub.s32 0, %v488
        %v490 = vrot.slane %v485, %v489
        %v492 = vadd.f32 %v483, %v490
        %v493 = vadd.f32 %v484, %v490
        %vm494 = vcmp.gt.f32.partialorder %v492, 0.0
        %vm495 = vcmp.gt.f32.partialorder %v493, 0.0
        %v496 = vmul.f32 %v492, 0.01
        %v497 = vmul.f32 %v493, 0.01
        %v498 = vsel %vm494, %v492, %v496
        %v499 = vsel %vm495, %v493, %v497
        %500 = vst [vmem:[%s205] sm:$0xff] %v498
        %501 = vst [vmem:[%s205 + $0x8] sm:$0x3f] %v499
        %p502 = scmp.lt.s32.totalorder %s18, 1
        %s503 = scalar_select %p502, %s18, 1
        %s504 = smul.addr %s503, 2
        %s505 = smul.addr %s504, 8
        %s506 = scalar_lea.vmem %s3, %s505
        // Predicated region
        $region41: #{tpu_custom_call.1} parent=31 // pred_check
          %p507 = pneg %p104
        $region42: #{tpu_custom_call.1} parent=31 // pred_check_branch
          %509 = sbr.rel (%p507) target = $region44
        $region43: #{tpu_custom_call.1} parent=31 // pred_region
          _
        $region44: #{tpu_custom_call.1} parent=31 // pred_fallthru
          _
      $region32: #{tpu_custom_call.1} parent=5 // pred_fallthru
        _
      %p510 = scmp.le.s32.totalorder 2, %s13
      // Predicated region
      $region45: #{tpu_custom_call.1} parent=5 // pred_check
        %p511 = pneg %p510
      $region46: #{tpu_custom_call.1} parent=5 // pred_check_branch
        %513 = sbr.rel (%p511) target = $region48
      $region47: #{tpu_custom_call.1} parent=5 // pred_region
        %s514 = ssub.s32 %s13, 2
        // Predicated region
        $region49: #{tpu_custom_call.1} parent=47 // pred_check
          %p515 = pneg %p110
        $region50: #{tpu_custom_call.1} parent=47 // pred_check_branch
          %517 = sbr.rel (%p515) target = $region52
        $region51: #{tpu_custom_call.1} parent=47 // pred_region
          %p518 = scmp.lt.s32.totalorder %s19, 1
          %s519 = scalar_select %p518, %s19, 1
          %s520 = smul.addr %s519, 2
          %s521 = smul.addr %s520, 8
          %s522 = scalar_lea.vmem %s3, %s521
        $region52: #{tpu_custom_call.1} parent=47 // pred_fallthru
          _
      $region48: #{tpu_custom_call.1} parent=5 // pred_fallthru
        _
    $region6: #{tpu_custom_call.1} parent=1 // loop_footer
      %s17 = sadd.s32 1, %s13
    $region7: #{tpu_custom_call.1} parent=1 // loop_footer_branch
      %12 = sbr.rel target = $region3
    $region8: #{tpu_custom_call.1} parent=1 // loop_exit
      _
    %523 = vsyncpa [#allocation3], 1
    %s524 = scalar_lea.sflag [#allocation3], 1
    %525 = vsyncpa %s524, 1
    %526 = vsyncpa [#allocation5], 1

</llo_original>
